<compile_context>
chip_gen: v6e
topology: v6e:2x2x1
jax: 0.10.0
libtpu: 0.0.40
codegen_flags: <defaults>
</compile_context>

<pallas_src>
import math
import functools

import jax
import jax.numpy as jnp
from jax.experimental import pallas as pl
from jax.experimental.pallas import tpu as pltpu


def _arcface_kernel(label_sm, x_ref, invx_ref, invw_ref, w_ref, label_ref,
                    out_ref, *, cos_m, sin_m, th, mm, s, block_c, easy_margin):
    j = pl.program_id(0)
    c0 = j * block_c
    c1 = c0 + block_c

    # [B, D] x [TC, D] -> [B, TC] on the MXU, contracting the shared last dim
    # (native orientation, no wn.T materialized), f32 accumulation.
    raw = jax.lax.dot_general(
        x_ref[...], w_ref[...],
        dimension_numbers=(((1,), (1,)), ((), ())),
        preferred_element_type=jnp.float32)

    # cosine = normalize(x) @ normalize(W).T, recovered by post-scaling with
    # the precomputed inverse L2 norms ([B,1] lane-broadcast, [1,TC] sublane-
    # broadcast — both cheap VPU multiplies fused into the epilogue).
    cosine = raw * invx_ref[...] * invw_ref[...]

    # Scalar gate (SMEM, prefetched labels): does any target class fall inside
    # this class tile?  B is small and static, so an unrolled scalar chain.
    hit = None
    for i in range(label_sm.shape[0]):
        li = label_sm[i]
        in_tile = jnp.logical_and(li >= c0, li < c1)
        hit = in_tile if hit is None else jnp.logical_or(hit, in_tile)

    @pl.when(jnp.logical_not(hit))
    def _cold():
        # No target column in this tile: output is just s * cosine.
        out_ref[...] = (cosine * s).astype(out_ref.dtype)

    @pl.when(hit)
    def _hot():
        sine = jnp.sqrt(jnp.maximum(1.0 - cosine * cosine, 0.0))
        phi = cosine * cos_m - sine * sin_m
        if easy_margin:
            phi = jnp.where(cosine > 0.0, phi, cosine)
        else:
            phi = jnp.where(cosine - th > 0.0, phi, cosine - mm)
        # one-hot blend collapsed into a single select (global class index).
        cls = c0 + jax.lax.broadcasted_iota(jnp.int32, cosine.shape, 1)
        blended = jnp.where(cls == label_ref[...], phi, cosine)
        out_ref[...] = (blended * s).astype(out_ref.dtype)

    # TODO(synk): class_to_superclass / mutex-mask branch not implemented
    # (module is constructed with class_to_superclass=None by default).


def arc_margin_product(x, weight, label, *, s=48.0, m=0.5, easy_margin=False,
                       compute_dtype=jnp.bfloat16, block_c=None):
    """ArcFace forward. x: [B, D] f32, weight: [C, D] f32, label: [B] int."""
    B, D = x.shape
    C, D2 = weight.shape
    assert D == D2
    itemsize = jnp.dtype(compute_dtype).itemsize

    # Class-tile size: multiple of 128 (lane-dense, unmasked vst), sized so the
    # double-buffered weight slab stays small enough for v7x's 64 MiB VMEM
    # while still amortizing per-grid-step overhead on v5e/v6e.
    if block_c is None:
        budget = 4 * 1024 * 1024                       # per weight buffer
        block_c = max(128, (budget // (D * itemsize)) // 128 * 128)
        block_c = int(min(block_c, 4096))
    assert block_c % 128 == 0
    n_tiles = -(-C // block_c)
    Cp = n_tiles * block_c

    # Inverse L2 norms with F.normalize eps semantics: 1/max(||v||, 1e-12).
    eps2 = 1e-24
    inv_x = jax.lax.rsqrt(
        jnp.maximum(jnp.sum(x * x, axis=1, keepdims=True), eps2)
    ).astype(jnp.float32)                               # [B, 1]
    inv_w = jax.lax.rsqrt(
        jnp.maximum(jnp.sum(weight * weight, axis=1), eps2)
    ).astype(jnp.float32)                               # [C]

    # Pad the class dim (padded inv_w = 0 so padded columns are exactly 0 and
    # cannot collide with labels; they are sliced off below).
    if Cp != C:
        weight = jnp.pad(weight, ((0, Cp - C), (0, 0)))
        inv_w = jnp.pad(inv_w, (0, Cp - C))
    inv_w = inv_w.reshape(1, Cp)

    x_c = x.astype(compute_dtype)
    w_c = weight.astype(compute_dtype)                  # bf16 halves HBM bytes
    label_sc = label.astype(jnp.int32)                  # SMEM scalar prefetch
    label2d = label_sc.reshape(B, 1)                    # VMEM column for select

    kernel = functools.partial(
        _arcface_kernel,
        cos_m=math.cos(m), sin_m=math.sin(m),
        th=math.cos(math.pi - m), mm=math.sin(math.pi - m) * m,
        s=float(s), block_c=block_c, easy_margin=easy_margin)

    # VMEM budget: double-buffered weight + output tiles plus the small
    # resident inputs, with 2x headroom (clamped for v7x's physical VMEM).
    vmem_bytes = (2 * block_c * D * itemsize            # weight double buffer
                  + 2 * B * block_c * 4                 # output double buffer
                  + 2 * (B * D * itemsize + block_c * 4 + 2 * B * 4))
    vmem_limit = int(min(max(2 * vmem_bytes, 16 * 1024 * 1024),
                         64 * 1024 * 1024))

    cost = pl.CostEstimate(
        flops=2 * B * Cp * D,
        transcendentals=B * Cp,
        bytes_accessed=(Cp * D * itemsize + B * D * itemsize
                        + B * Cp * 4 + Cp * 4 + 2 * B * 4),
    )

    out = pl.pallas_call(
        kernel,
        out_shape=jax.ShapeDtypeStruct((B, Cp), jnp.float32),
        grid_spec=pltpu.PrefetchScalarGridSpec(
            num_scalar_prefetch=1,
            grid=(n_tiles,),
            in_specs=[
                pl.BlockSpec((B, D), lambda j, lbl: (0, 0)),          # x
                pl.BlockSpec((B, 1), lambda j, lbl: (0, 0)),          # inv_x
                pl.BlockSpec((1, block_c), lambda j, lbl: (0, j)),    # inv_w
                pl.BlockSpec((block_c, D), lambda j, lbl: (j, 0)),    # weight
                pl.BlockSpec((B, 1), lambda j, lbl: (0, 0)),          # label col
            ],
            out_specs=pl.BlockSpec((B, block_c), lambda j, lbl: (0, j)),
        ),
        compiler_params=pltpu.CompilerParams(
            dimension_semantics=("parallel",),          # shards over v7x's 2 TCs
            vmem_limit_bytes=vmem_limit,
        ),
        cost_estimate=cost,
    )(label_sc, x_c, inv_x, inv_w, w_c, label2d)

    return out[:, :C]
    # TODO(synk): for large B in production, add a second "parallel" grid axis
    # tiling the batch; at B=8 the kernel is weight-bandwidth bound and padding
    # B further would waste VMEM.


# ----------------------------- references -----------------------------------

def _reference_f32(x, weight, label, *, s=48.0, m=0.5):
    """Direct transcription of the PyTorch forward (easy_margin=False)."""
    cos_m, sin_m = math.cos(m), math.sin(m)
    th, mm = math.cos(math.pi - m), math.sin(math.pi - m) * m
    xn = x / jnp.maximum(jnp.linalg.norm(x, axis=1, keepdims=True), 1e-12)
    wn = weight / jnp.maximum(jnp.linalg.norm(weight, axis=1, keepdims=True), 1e-12)
    cosine = xn @ wn.T
    sine = jnp.sqrt(jnp.maximum(1.0 - cosine ** 2, 0.0))
    phi = cosine * cos_m - sine * sin_m
    phi = jnp.where(cosine - th > 0, phi, cosine - mm)
    one_hot = jax.nn.one_hot(label, weight.shape[0], dtype=jnp.float32)
    return (one_hot * phi + (1.0 - one_hot) * cosine) * s


def _reference_mixed(x, weight, label, *, s, m, compute_dtype):
    """Mirrors the kernel's mixed-precision recipe (bf16 matmul, f32 norms)."""
    cos_m, sin_m = math.cos(m), math.sin(m)
    th, mm = math.cos(math.pi - m), math.sin(math.pi - m) * m
    inv_x = jax.lax.rsqrt(jnp.maximum(jnp.sum(x * x, 1, keepdims=True), 1e-24))
    inv_w = jax.lax.rsqrt(jnp.maximum(jnp.sum(weight * weight, 1, keepdims=True), 1e-24))
    raw = jnp.dot(x.astype(compute_dtype), weight.astype(compute_dtype).T,
                  preferred_element_type=jnp.float32)
    cosine = raw * inv_x * inv_w.T
    sine = jnp.sqrt(jnp.maximum(1.0 - cosine ** 2, 0.0))
    phi = cosine * cos_m - sine * sin_m
    phi = jnp.where(cosine - th > 0, phi, cosine - mm)
    one_hot = jax.nn.one_hot(label, weight.shape[0], dtype=jnp.float32)
    return (one_hot * phi + (1.0 - one_hot) * cosine) * s


if __name__ == "__main__":
    in_features = 128
    num_classes = 200
    batch = 8
    s_scale, margin = 48.0, 0.5

    key = jax.random.PRNGKey(0)
    kx, kw, kl = jax.random.split(key, 3)

    x = jax.random.normal(kx, (batch, in_features), dtype=jnp.float32)
    bound = math.sqrt(6.0 / (in_features + num_classes))     # Xavier uniform
    weight = jax.random.uniform(kw, (num_classes, in_features),
                                minval=-bound, maxval=bound, dtype=jnp.float32)
    label = jax.random.randint(kl, (batch,), 0, num_classes, dtype=jnp.int32)

    # f32 path: must match the PyTorch formula tightly (C padded 200->256,
    # block_c=128 -> 2 grid steps, exercising tiling + the label gate).
    out_f32 = jax.block_until_ready(arc_margin_product(
        x, weight, label, s=s_scale, m=margin,
        compute_dtype=jnp.float32, block_c=128))
    ref_f32 = _reference_f32(x, weight, label, s=s_scale, m=margin)
    assert out_f32.shape == (batch, num_classes)
    assert jnp.allclose(out_f32, ref_f32, atol=2e-3, rtol=2e-3), \
        "f32 kernel mismatch vs reference"

    # Default fast path (bf16 weight/activation stream, f32 accumulation),
    # checked against a reference using the same mixed-precision recipe and
    # sanity-bounded against the pure-f32 reference.
    out_bf16 = jax.block_until_ready(arc_margin_product(
        x, weight, label, s=s_scale, m=margin, block_c=128))
    ref_bf16 = _reference_mixed(x, weight, label, s=s_scale, m=margin,
                                compute_dtype=jnp.bfloat16)
    assert out_bf16.shape == (batch, num_classes)
    assert jnp.allclose(out_bf16, ref_bf16, atol=5e-2, rtol=5e-2), \
        "bf16 kernel mismatch vs mixed-precision reference"
    assert float(jnp.max(jnp.abs(out_bf16 - ref_f32))) < 1.0, \
        "bf16 kernel drifted too far from f32 reference"

    print("KERNEL_OK")
</pallas_src>

<mosaic_0001>
module attributes {stable_mosaic.version = 11 : i64} {
  func.func @_arcface_kernel(%arg0: i32, %arg1: memref<8xi32, #tpu.memory_space<smem>>, %arg2: memref<8x128xf32, #tpu.memory_space<vmem>>, %arg3: memref<8x1xf32, #tpu.memory_space<vmem>>, %arg4: memref<1x128xf32, #tpu.memory_space<vmem>>, %arg5: memref<128x128xf32, #tpu.memory_space<vmem>>, %arg6: memref<8x1xi32, #tpu.memory_space<vmem>>, %arg7: memref<8x128xf32, #tpu.memory_space<vmem>>) attributes {dimension_semantics = [#tpu.dimension_semantics<parallel>], iteration_bounds = array<i64: 2>, scalar_prefetch = 1 : i64, scratch_operands = 0 : i64, tpu.core_type = #tpu.core_type<tc>, window_params = [{pipeline_mode = #tpu.pipeline_mode<synchronous>, transform_indices = @transform_0, window_bounds = array<i64: 8, 128>}, {pipeline_mode = #tpu.pipeline_mode<synchronous>, transform_indices = @transform_1, window_bounds = array<i64: 8, 1>}, {transform_indices = @transform_2, window_bounds = array<i64: 1, 128>}, {transform_indices = @transform_3, window_bounds = array<i64: 128, 128>}, {pipeline_mode = #tpu.pipeline_mode<synchronous>, transform_indices = @transform_4, window_bounds = array<i64: 8, 1>}, {transform_indices = @transform_5, window_bounds = array<i64: 8, 128>}]} {
    %c128_i32 = arith.constant 128 : i32
    %0 = arith.muli %arg0, %c128_i32 : i32
    %c128_i32_0 = arith.constant 128 : i32
    %1 = arith.addi %0, %c128_i32_0 : i32
    %c0 = arith.constant 0 : index
    %c0_1 = arith.constant 0 : index
    %2 = vector.load %arg2[%c0, %c0_1] : memref<8x128xf32, #tpu.memory_space<vmem>>, vector<8x128xf32>
    %c0_2 = arith.constant 0 : index
    %c0_3 = arith.constant 0 : index
    %3 = vector.load %arg5[%c0_2, %c0_3] : memref<128x128xf32, #tpu.memory_space<vmem>>, vector<128x128xf32>
    %cst = arith.constant dense<0.000000e+00> : vector<8x128xf32>
    %4 = tpu.matmul %2, %3, %cst {dimension_numbers = #tpu.dot_dimension_numbers<[1], [1], [0], [0], [0, 0, 1, 0], [], []>} : vector<8x128xf32>, vector<128x128xf32>, vector<8x128xf32> -> vector<8x128xf32>
    %c0_4 = arith.constant 0 : index
    %c0_5 = arith.constant 0 : index
    %5 = vector.load %arg3[%c0_4, %c0_5] : memref<8x1xf32, #tpu.memory_space<vmem>>, vector<8x1xf32>
    %6 = vector.broadcast %5 : vector<8x1xf32> to vector<8x128xf32>
    %7 = arith.mulf %4, %6 : vector<8x128xf32>
    %c0_6 = arith.constant 0 : index
    %c0_7 = arith.constant 0 : index
    %8 = vector.load %arg4[%c0_6, %c0_7] : memref<1x128xf32, #tpu.memory_space<vmem>>, vector<1x128xf32>
    %9 = vector.broadcast %8 : vector<1x128xf32> to vector<8x128xf32>
    %10 = arith.mulf %7, %9 : vector<8x128xf32>
    %c0_8 = arith.constant 0 : index
    %11 = memref.load %arg1[%c0_8] : memref<8xi32, #tpu.memory_space<smem>>
    %12 = arith.cmpi sge, %11, %0 : i32
    %13 = arith.cmpi slt, %11, %1 : i32
    %14 = arith.andi %12, %13 : i1
    %c1 = arith.constant 1 : index
    %15 = memref.load %arg1[%c1] : memref<8xi32, #tpu.memory_space<smem>>
    %16 = arith.cmpi sge, %15, %0 : i32
    %17 = arith.cmpi slt, %15, %1 : i32
    %18 = arith.andi %16, %17 : i1
    %19 = arith.ori %14, %18 : i1
    %c2 = arith.constant 2 : index
    %20 = memref.load %arg1[%c2] : memref<8xi32, #tpu.memory_space<smem>>
    %21 = arith.cmpi sge, %20, %0 : i32
    %22 = arith.cmpi slt, %20, %1 : i32
    %23 = arith.andi %21, %22 : i1
    %24 = arith.ori %19, %23 : i1
    %c3 = arith.constant 3 : index
    %25 = memref.load %arg1[%c3] : memref<8xi32, #tpu.memory_space<smem>>
    %26 = arith.cmpi sge, %25, %0 : i32
    %27 = arith.cmpi slt, %25, %1 : i32
    %28 = arith.andi %26, %27 : i1
    %29 = arith.ori %24, %28 : i1
    %c4 = arith.constant 4 : index
    %30 = memref.load %arg1[%c4] : memref<8xi32, #tpu.memory_space<smem>>
    %31 = arith.cmpi sge, %30, %0 : i32
    %32 = arith.cmpi slt, %30, %1 : i32
    %33 = arith.andi %31, %32 : i1
    %34 = arith.ori %29, %33 : i1
    %c5 = arith.constant 5 : index
    %35 = memref.load %arg1[%c5] : memref<8xi32, #tpu.memory_space<smem>>
    %36 = arith.cmpi sge, %35, %0 : i32
    %37 = arith.cmpi slt, %35, %1 : i32
    %38 = arith.andi %36, %37 : i1
    %39 = arith.ori %34, %38 : i1
    %c6 = arith.constant 6 : index
    %40 = memref.load %arg1[%c6] : memref<8xi32, #tpu.memory_space<smem>>
    %41 = arith.cmpi sge, %40, %0 : i32
    %42 = arith.cmpi slt, %40, %1 : i32
    %43 = arith.andi %41, %42 : i1
    %44 = arith.ori %39, %43 : i1
    %c7 = arith.constant 7 : index
    %45 = memref.load %arg1[%c7] : memref<8xi32, #tpu.memory_space<smem>>
    %46 = arith.cmpi sge, %45, %0 : i32
    %47 = arith.cmpi slt, %45, %1 : i32
    %48 = arith.andi %46, %47 : i1
    %49 = arith.ori %44, %48 : i1
    %true = arith.constant true
    %50 = arith.xori %49, %true : i1
    %51 = arith.extui %50 : i1 to i32
    %c0_i32 = arith.constant 0 : i32
    %52 = arith.cmpi ne, %51, %c0_i32 : i32
    scf.if %52 {
      %cst_10 = arith.constant 4.800000e+01 : f32
      %55 = vector.broadcast %cst_10 : f32 to vector<8x128xf32>
      %56 = arith.mulf %10, %55 : vector<8x128xf32>
      %c0_11 = arith.constant 0 : index
      %c0_12 = arith.constant 0 : index
      %57 = vector.load %arg7[%c0_11, %c0_12] : memref<8x128xf32, #tpu.memory_space<vmem>>, vector<8x128xf32>
      tpu.vector_store %arg7[%c0_11, %c0_12], %56 {strides = array<i32>} : memref<8x128xf32, #tpu.memory_space<vmem>>, vector<8x128xf32>,
    } else {
    }
    %53 = arith.extui %49 : i1 to i32
    %c0_i32_9 = arith.constant 0 : i32
    %54 = arith.cmpi ne, %53, %c0_i32_9 : i32
    scf.if %54 {
      %55 = arith.mulf %10, %10 : vector<8x128xf32>
      %cst_10 = arith.constant 1.000000e+00 : f32
      %56 = vector.broadcast %cst_10 : f32 to vector<8x128xf32>
      %57 = arith.subf %56, %55 : vector<8x128xf32>
      %cst_11 = arith.constant 0.000000e+00 : f32
      %58 = vector.broadcast %cst_11 : f32 to vector<8x128xf32>
      %59 = arith.maximumf %57, %58 : vector<8x128xf32>
      %60 = math.sqrt %59 : vector<8x128xf32>
      %cst_12 = arith.constant 0.87758255 : f32
      %61 = vector.broadcast %cst_12 : f32 to vector<8x128xf32>
      %62 = arith.mulf %10, %61 : vector<8x128xf32>
      %cst_13 = arith.constant 0.47942555 : f32
      %63 = vector.broadcast %cst_13 : f32 to vector<8x128xf32>
      %64 = arith.mulf %60, %63 : vector<8x128xf32>
      %65 = arith.subf %62, %64 : vector<8x128xf32>
      %cst_14 = arith.constant -0.87758255 : f32
      %66 = vector.broadcast %cst_14 : f32 to vector<8x128xf32>
      %67 = arith.subf %10, %66 : vector<8x128xf32>
      %cst_15 = arith.constant 0.000000e+00 : f32
      %68 = vector.broadcast %cst_15 : f32 to vector<8x128xf32>
      %69 = arith.cmpf ogt, %67, %68 : vector<8x128xf32>
      %cst_16 = arith.constant 0.239712775 : f32
      %70 = vector.broadcast %cst_16 : f32 to vector<8x128xf32>
      %71 = arith.subf %10, %70 : vector<8x128xf32>
      %72 = arith.select %69, %65, %71 : vector<8x128xi1>, vector<8x128xf32>
      %73 = tpu.iota {dimensions = array<i32: 1>} : vector<8x128xi32>
      %74 = vector.broadcast %0 : i32 to vector<8x128xi32>
      %75 = arith.addi %74, %73 : vector<8x128xi32>
      %c0_17 = arith.constant 0 : index
      %c0_18 = arith.constant 0 : index
      %76 = vector.load %arg6[%c0_17, %c0_18] : memref<8x1xi32, #tpu.memory_space<vmem>>, vector<8x1xi32>
      %77 = vector.broadcast %76 : vector<8x1xi32> to vector<8x128xi32>
      %78 = arith.cmpi eq, %75, %77 : vector<8x128xi32>
      %79 = arith.select %78, %72, %10 : vector<8x128xi1>, vector<8x128xf32>
      %cst_19 = arith.constant 4.800000e+01 : f32
      %80 = vector.broadcast %cst_19 : f32 to vector<8x128xf32>
      %81 = arith.mulf %79, %80 : vector<8x128xf32>
      %c0_20 = arith.constant 0 : index
      %c0_21 = arith.constant 0 : index
      %82 = vector.load %arg7[%c0_20, %c0_21] : memref<8x128xf32, #tpu.memory_space<vmem>>, vector<8x128xf32>
      tpu.vector_store %arg7[%c0_20, %c0_21], %81 {strides = array<i32>} : memref<8x128xf32, #tpu.memory_space<vmem>>, vector<8x128xf32>,
    } else {
    }
    return
  }
  func.func @transform_0(%arg0: i32, %arg1: memref<8xi32, #tpu.memory_space<smem>>) -> (i32, i32) {
    %c0_i32 = arith.constant 0 : i32
    %c0_i32_0 = arith.constant 0 : i32
    %c0_i32_1 = arith.constant 0 : i32
    return %c0_i32, %c0_i32_0 : i32, i32
  }
  func.func @transform_1(%arg0: i32, %arg1: memref<8xi32, #tpu.memory_space<smem>>) -> (i32, i32) {
    %c0_i32 = arith.constant 0 : i32
    %c0_i32_0 = arith.constant 0 : i32
    %c0_i32_1 = arith.constant 0 : i32
    return %c0_i32, %c0_i32_0 : i32, i32
  }
  func.func @transform_2(%arg0: i32, %arg1: memref<8xi32, #tpu.memory_space<smem>>) -> (i32, i32) {
    %c0_i32 = arith.constant 0 : i32
    %c0_i32_0 = arith.constant 0 : i32
    return %c0_i32, %arg0 : i32, i32
  }
  func.func @transform_3(%arg0: i32, %arg1: memref<8xi32, #tpu.memory_space<smem>>) -> (i32, i32) {
    %c0_i32 = arith.constant 0 : i32
    %c0_i32_0 = arith.constant 0 : i32
    return %arg0, %c0_i32 : i32, i32
  }
  func.func @transform_4(%arg0: i32, %arg1: memref<8xi32, #tpu.memory_space<smem>>) -> (i32, i32) {
    %c0_i32 = arith.constant 0 : i32
    %c0_i32_0 = arith.constant 0 : i32
    %c0_i32_1 = arith.constant 0 : i32
    return %c0_i32, %c0_i32_0 : i32, i32
  }
  func.func @transform_5(%arg0: i32, %arg1: memref<8xi32, #tpu.memory_space<smem>>) -> (i32, i32) {
    %c0_i32 = arith.constant 0 : i32
    %c0_i32_0 = arith.constant 0 : i32
    return %c0_i32, %arg0 : i32, i32
  }
}

</mosaic_0001>

<llo_original>
// kernel: tpu_custom_call.1
$region0: #{tpu_custom_call.1}
  #allocation0 [shape = 'u32[]', space=smem, size = 0x4, offset = 0x4, fixed_abs, tag = 'smem constant byte address 0x4 - core index']
  #allocation1 [shape = 'u32[144,128]{1,0:T(1,128)}', space=vmem, size = 0x12000, scoped, tag = 'internal scratch']
  #allocation2 [shape = 's32[1]{0}', space=sflag, size = 0x4, scoped, tag = 'scoped memory for tpu_custom_call.1']
  #allocation3 [shape = 'u8[512]{0}', space=smem, size = 0x200, scoped, tag = 'prefetched SMEM operand 0']
  %s0 = inlined_call_operand.vmem [shape: s32[8], index: 0, kind: input, shape index: {}]
  %s1 = inlined_call_operand.vmem [shape: f32[8,128], index: 1, kind: input, shape index: {}]
  %s2 = inlined_call_operand.vmem [shape: f32[8,1], index: 2, kind: input, shape index: {}]
  %s3 = inlined_call_operand.vmem [shape: f32[1,256], index: 3, kind: input, shape index: {}]
  %s4 = inlined_call_operand.hbm [shape: f32[256,128], index: 4, kind: input, shape index: {}]
  %s5 = inlined_call_operand.vmem [shape: s32[8,1], index: 5, kind: input, shape index: {}]
  %s6 = inlined_call_operand.hbm [shape: f32[8,256], index: 6, kind: output, shape index: {}]
  %s7 = sld [smem:[#allocation0]]
  $region65: #{tpu_custom_call.1} parent=0
    _
  %s9 = ssub.s32 1, %s7
  %s10 = scalar_select 0, %s9, %s7
  %s11 = sshll.u32 %s0, 4
  %s12 = int_to_ptr.vmem [resolvable:$true] %s11
  %14 = dma.vmem_to_smem %s12, 16, [#allocation3], [#allocation2]
  %15 = dma.done [#allocation2], 16
  %16 = sfence
  $region1: #{tpu_custom_call.1} parent=0
    #allocation4 [shape = 'u8[131072]{0}', space=vmem, size = 0x20000, scoped, tag = 'input window, operand 4']
    #allocation5 [shape = 's32[2]{0}', space=sflag, size = 0x8, scoped, tag = 'scoped memory for tpu_custom_call.1']
    #allocation6 [shape = 's32[2]{0}', space=sflag, size = 0x8, scoped, tag = 'scoped memory for tpu_custom_call.1']
    #allocation7 [shape = 'u8[8192]{0}', space=vmem, size = 0x2000, scoped, tag = 'output window, operand 0']
    %17 = vsyncpa [#allocation5], 0
    %s18 = scalar_lea.sflag [#allocation5], 1
    %19 = vsyncpa %s18, 0
    %20 = vsyncpa [#allocation6], 0
    %s21 = scalar_lea.sflag [#allocation6], 1
    %22 = vsyncpa %s21, 0
    loop: start=0, step=1, limit=4
    $region2: #{tpu_custom_call.1} parent=1 // loop_pre_header
      _
    $region3: #{tpu_custom_call.1} parent=1 // loop_header
      %s24 = sphi 0, %s28
      %p25 = scmp.ge.s32.totalorder %s24, 4
      %s32 = sphi 0, %s32
      %s34 = sphi 0, %s32
      %s35 = sphi 0, %s34
      %s49 = sphi 0, %s35
      %s53 = sphi 0, %s53
      %s55 = sphi 0, %s53
      %s56 = sphi 0, %s55
      %s70 = sphi 0, %s56
      %s76 = sphi 0, %s78
      %s79 = sphi 0, %s76
      %s80 = sphi 0, %s79
      %s96 = sphi 0, %s80
      %s102 = sphi 0, %s104
      %s105 = sphi 0, %s102
      %s106 = sphi 0, %s105
      %s122 = sphi 0, %s106
      %s126 = sphi 0, %s126
      %s128 = sphi 0, %s126
      %s129 = sphi 0, %s128
      %s143 = sphi 0, %s129
      %s149 = sphi 0, %s151
      %s152 = sphi 0, %s149
      %s153 = sphi 0, %s152
      %s169 = sphi 0, %s153
    $region4: #{tpu_custom_call.1} parent=1 // loop_header_branch
      %27 = sbr.rel (%p25) target = $region8
    $region5: #{tpu_custom_call.1} parent=1 // loop_body
      %s29 = ssub.s32 %s24, 1
      %s30 = ssub.s32 %s24, 2
      %s31 = sadd.s32 %s24, 1
      %s33 = sadd.s32 %s32, 1
      %p36 = scmp.eq.s32.totalorder %s24, 1
      %p37 = scmp.ne.s32.totalorder %s32, %s34
      %p38 = scmp.eq.s32.totalorder %s24, 0
      %p39 = por %p37, %p38
      %p40 = scmp.ne.s32.totalorder %s32, %s34
      %p41 = scmp.eq.s32.totalorder %s29, 1
      %p42 = por %p40, %p41
      %p43 = scmp.ne.s32.totalorder %s34, %s35
      %p44 = scmp.eq.s32.totalorder %s29, 0
      %p45 = por %p43, %p44
      %p46 = scmp.ne.s32.totalorder %s34, %s35
      %p47 = scmp.eq.s32.totalorder %s30, 1
      %p48 = por %p46, %p47
      %p50 = scmp.ne.s32.totalorder %s35, %s49
      %p51 = scmp.eq.s32.totalorder %s30, 0
      %p52 = por %p50, %p51
      %s54 = sadd.s32 %s53, 1
      %p57 = scmp.eq.s32.totalorder %s24, 1
      %p58 = scmp.ne.s32.totalorder %s53, %s55
      %p59 = scmp.eq.s32.totalorder %s24, 0
      %p60 = por %p58, %p59
      %p61 = scmp.ne.s32.totalorder %s53, %s55
      %p62 = scmp.eq.s32.totalorder %s29, 1
      %p63 = por %p61, %p62
      %p64 = scmp.ne.s32.totalorder %s55, %s56
      %p65 = scmp.eq.s32.totalorder %s29, 0
      %p66 = por %p64, %p65
      %p67 = scmp.ne.s32.totalorder %s55, %s56
      %p68 = scmp.eq.s32.totalorder %s30, 1
      %p69 = por %p67, %p68
      %p71 = scmp.ne.s32.totalorder %s56, %s70
      %p72 = scmp.eq.s32.totalorder %s30, 0
      %p73 = por %p71, %p72
      %s74 = ssub.s32 %s24, %s31
      %p75 = scmp.eq.s32.totalorder %s74, 0
      %s77 = sadd.s32 %s76, 1
      %s78 = scalar_select %p75, %s76, %s77
      %p81 = pneg %p75
      %p82 = scmp.eq.s32.totalorder %s24, 1
      %p83 = por %p81, %p82
      %p84 = scmp.ne.s32.totalorder %s76, %s79
      %p85 = scmp.eq.s32.totalorder %s24, 0
      %p86 = por %p84, %p85
      %p87 = scmp.ne.s32.totalorder %s76, %s79
      %p88 = scmp.eq.s32.totalorder %s29, 1
      %p89 = por %p87, %p88
      %p90 = scmp.ne.s32.totalorder %s79, %s80
      %p91 = scmp.eq.s32.totalorder %s29, 0
      %p92 = por %p90, %p91
      %p93 = scmp.ne.s32.totalorder %s79, %s80
      %p94 = scmp.eq.s32.totalorder %s30, 1
      %p95 = por %p93, %p94
      %p97 = scmp.ne.s32.totalorder %s80, %s96
      %p98 = scmp.eq.s32.totalorder %s30, 0
      %p99 = por %p97, %p98
      %s100 = ssub.s32 %s24, %s31
      %p101 = scmp.eq.s32.totalorder %s100, 0
      %s103 = sadd.s32 %s102, 1
      %s104 = scalar_select %p101, %s102, %s103
      %p107 = pneg %p101
      %p108 = scmp.eq.s32.totalorder %s24, 1
      %p109 = por %p107, %p108
      %p110 = scmp.ne.s32.totalorder %s102, %s105
      %p111 = scmp.eq.s32.totalorder %s24, 0
      %p112 = por %p110, %p111
      %p113 = scmp.ne.s32.totalorder %s102, %s105
      %p114 = scmp.eq.s32.totalorder %s29, 1
      %p115 = por %p113, %p114
      %p116 = scmp.ne.s32.totalorder %s105, %s106
      %p117 = scmp.eq.s32.totalorder %s29, 0
      %p118 = por %p116, %p117
      %p119 = scmp.ne.s32.totalorder %s105, %s106
      %p120 = scmp.eq.s32.totalorder %s30, 1
      %p121 = por %p119, %p120
      %p123 = scmp.ne.s32.totalorder %s106, %s122
      %p124 = scmp.eq.s32.totalorder %s30, 0
      %p125 = por %p123, %p124
      %s127 = sadd.s32 %s126, 1
      %p130 = scmp.eq.s32.totalorder %s24, 1
      %p131 = scmp.ne.s32.totalorder %s126, %s128
      %p132 = scmp.eq.s32.totalorder %s24, 0
      %p133 = por %p131, %p132
      %p134 = scmp.ne.s32.totalorder %s126, %s128
      %p135 = scmp.eq.s32.totalorder %s29, 1
      %p136 = por %p134, %p135
      %p137 = scmp.ne.s32.totalorder %s128, %s129
      %p138 = scmp.eq.s32.totalorder %s29, 0
      %p139 = por %p137, %p138
      %p140 = scmp.ne.s32.totalorder %s128, %s129
      %p141 = scmp.eq.s32.totalorder %s30, 1
      %p142 = por %p140, %p141
      %p144 = scmp.ne.s32.totalorder %s129, %s143
      %p145 = scmp.eq.s32.totalorder %s30, 0
      %p146 = por %p144, %p145
      %s147 = ssub.s32 %s24, %s31
      %p148 = scmp.eq.s32.totalorder %s147, 0
      %s150 = sadd.s32 %s149, 1
      %s151 = scalar_select %p148, %s149, %s150
      %p154 = pneg %p148
      %p155 = scmp.eq.s32.totalorder %s24, 1
      %p156 = por %p154, %p155
      %p157 = scmp.ne.s32.totalorder %s149, %s152
      %p158 = scmp.eq.s32.totalorder %s24, 0
      %p159 = por %p157, %p158
      %p160 = scmp.ne.s32.totalorder %s149, %s152
      %p161 = scmp.eq.s32.totalorder %s29, 1
      %p162 = por %p160, %p161
      %p163 = scmp.ne.s32.totalorder %s152, %s153
      %p164 = scmp.eq.s32.totalorder %s29, 0
      %p165 = por %p163, %p164
      %p166 = scmp.ne.s32.totalorder %s152, %s153
      %p167 = scmp.eq.s32.totalorder %s30, 1
      %p168 = por %p166, %p167
      %p170 = scmp.ne.s32.totalorder %s153, %s169
      %p171 = scmp.eq.s32.totalorder %s30, 0
      %p172 = por %p170, %p171
      %p173 = scmp.le.s32.totalorder 1, %s24
      %p174 = scmp.lt.s32.totalorder %s24, 3
      %p175 = pnand %p173, %p174
      %p176 = pneg %p175
      // Predicated region
      $region9: #{tpu_custom_call.1} parent=5 // pred_check
        _
      $region10: #{tpu_custom_call.1} parent=5 // pred_check_branch
        %178 = sbr.rel (%p175) target = $region12
      $region11: #{tpu_custom_call.1} parent=5 // pred_region
        %s179 = ssub.s32 %s24, 1
        // Predicated region
        $region13: #{tpu_custom_call.1} parent=11 // pred_check
          %p180 = pneg %p45
        $region14: #{tpu_custom_call.1} parent=11 // pred_check_branch
          %182 = sbr.rel (%p180) target = $region16
        $region15: #{tpu_custom_call.1} parent=11 // pred_region
          _
        $region16: #{tpu_custom_call.1} parent=11 // pred_fallthru
          _
        // Predicated region
        $region17: #{tpu_custom_call.1} parent=11 // pred_check
          %p183 = pneg %p66
        $region18: #{tpu_custom_call.1} parent=11 // pred_check_branch
          %185 = sbr.rel (%p183) target = $region20
        $region19: #{tpu_custom_call.1} parent=11 // pred_region
          _
        $region20: #{tpu_custom_call.1} parent=11 // pred_fallthru
          _
        // Predicated region
        $region21: #{tpu_custom_call.1} parent=11 // pred_check
          %p186 = pneg %p139
        $region22: #{tpu_custom_call.1} parent=11 // pred_check_branch
          %188 = sbr.rel (%p186) target = $region24
        $region23: #{tpu_custom_call.1} parent=11 // pred_region
          _
        $region24: #{tpu_custom_call.1} parent=11 // pred_fallthru
          _
      $region12: #{tpu_custom_call.1} parent=5 // pred_fallthru
        _
      %p189 = scmp.lt.s32.totalorder %s24, 2
      // Predicated region
      $region25: #{tpu_custom_call.1} parent=5 // pred_check
        %p190 = pneg %p189
      $region26: #{tpu_custom_call.1} parent=5 // pred_check_branch
        %192 = sbr.rel (%p190) target = $region28
      $region27: #{tpu_custom_call.1} parent=5 // pred_region
        // Predicated region
        $region29: #{tpu_custom_call.1} parent=27 // pred_check
          %p193 = pneg %p86
        $region30: #{tpu_custom_call.1} parent=27 // pred_check_branch
          %195 = sbr.rel (%p193) target = $region32
        $region31: #{tpu_custom_call.1} parent=27 // pred_region
          %p196 = scmp.lt.s32.totalorder %s24, 1
          %s197 = scalar_select %p196, %s24, 1
          %s198 = scalar_lea.vmem %s3, %s197
        $region32: #{tpu_custom_call.1} parent=27 // pred_fallthru
          _
        // Predicated region
        $region33: #{tpu_custom_call.1} parent=27 // pred_check
          %p199 = pneg %p112
        $region34: #{tpu_custom_call.1} parent=27 // pred_check_branch
          %201 = sbr.rel (%p199) target = $region36
        $region35: #{tpu_custom_call.1} parent=27 // pred_region
          %s202 = sand.u32 %s102, 1
          %s203 = scalar_lea.sflag [#allocation5], %s202
          %s204 = sand.u32 %s102, 1
          %s205 = smul.addr %s204, 128
          %s206 = scalar_lea.vmem [#allocation4], %s205
          %s207 = smul.u32 16, %s24
          %s209 = ssub.s32 2048, 2048
          %210 = vsyncadd %s203, %s209
          %s211 = smul.addr %s207, 128
          %s212 = scalar_lea.hbm %s4, %s211
          %s213 = sshll.u32 %s206, 4
          %s214 = int_to_ptr.vmem [resolvable:$true] %s213
          %219 = dma.hbm_to_vmem [thread:$0]  %s212, 2048, %s214, %s203, 128, 128, 8
        $region36: #{tpu_custom_call.1} parent=27 // pred_fallthru
          _
      $region28: #{tpu_custom_call.1} parent=5 // pred_fallthru
        _
      %p220 = scmp.le.s32.totalorder 1, %s24
      %p221 = scmp.lt.s32.totalorder %s24, 3
      %p222 = pnand %p220, %p221
      %p223 = pneg %p222
      // Predicated region
      $region37: #{tpu_custom_call.1} parent=5 // pred_check
        _
      $region38: #{tpu_custom_call.1} parent=5 // pred_check_branch
        %225 = sbr.rel (%p222) target = $region40
      $region39: #{tpu_custom_call.1} parent=5 // pred_region
        %s226 = ssub.s32 %s24, 1
        %s227 = sand.u32 %s105, 1
        %s228 = scalar_lea.sflag [#allocation5], %s227
        %s229 = sand.u32 %s105, 1
        %s230 = smul.addr %s229, 128
        %s231 = scalar_lea.vmem [#allocation4], %s230
        // Predicated region
        $region41: #{tpu_custom_call.1} parent=39 // pred_check
          %p232 = pneg %p118
        $region42: #{tpu_custom_call.1} parent=39 // pred_check_branch
          %234 = sbr.rel (%p232) target = $region44
        $region43: #{tpu_custom_call.1} parent=39 // pred_region
          %235 = dma.done %s228, 2048
        $region44: #{tpu_custom_call.1} parent=39 // pred_fallthru
          _
        %p236 = pneg %p45
        %p237 = pneg %p42
        %p238 = pneg %p66
        %p239 = pneg %p63
        %p240 = scmp.lt.s32.totalorder %s29, 1
        %s241 = scalar_select %p240, %s29, 1
        %s242 = scalar_lea.vmem %s3, %s241
        %p243 = pneg %p92
        %p244 = pneg %p89
        %s245 = sand.u32 %s105, 1
        %s246 = scalar_lea.sflag [#allocation5], %s245
        %s247 = sand.u32 %s105, 1
        %s248 = smul.addr %s247, 128
        %s249 = scalar_lea.vmem [#allocation4], %s248
        %p250 = pneg %p118
        %p251 = pneg %p115
        %p252 = pneg %p139
        %p253 = pneg %p136
        %p254 = pneg %p165
        %p255 = pneg %p162
        %s256 = sand.u32 %s152, 1
        %s257 = scalar_lea.sflag [#allocation6], %s256
        %s258 = sand.u32 %s152, 1
        %s259 = smul.addr %s258, 8
        %s260 = scalar_lea.vmem [#allocation7], %s259
        %p261 = scmp.lt.s32.totalorder %s29, 1
        %s262 = scalar_select %p261, %s29, 1
        %s263 = scalar_lea.vmem %s3, %s262
        %s264 = smul.u32 16, %s29
        %s265 = smul.u32 %s29, 128
        %s266 = sadd.s32 %s265, 128
        %v267 = vld [vmem:[%s1] sm:$0xff]
        %v268 = vld [vmem:[%s231] sm:$0xff]
        %v269 = vld [vmem:[%s231 + $0x8] sm:$0xff]
        %v270 = vld [vmem:[%s231 + $0x10] sm:$0xff]
        %v271 = vld [vmem:[%s231 + $0x18] sm:$0xff]
        %v272 = vld [vmem:[%s231 + $0x20] sm:$0xff]
        %v273 = vld [vmem:[%s231 + $0x28] sm:$0xff]
        %v274 = vld [vmem:[%s231 + $0x30] sm:$0xff]
        %v275 = vld [vmem:[%s231 + $0x38] sm:$0xff]
        %v276 = vld [vmem:[%s231 + $0x40] sm:$0xff]
        %v277 = vld [vmem:[%s231 + $0x48] sm:$0xff]
        %v278 = vld [vmem:[%s231 + $0x50] sm:$0xff]
        %v279 = vld [vmem:[%s231 + $0x58] sm:$0xff]
        %v280 = vld [vmem:[%s231 + $0x60] sm:$0xff]
        %v281 = vld [vmem:[%s231 + $0x68] sm:$0xff]
        %v282 = vld [vmem:[%s231 + $0x70] sm:$0xff]
        %v283 = vld [vmem:[%s231 + $0x78] sm:$0xff]
        %284 = vmatprep.subr.mxu0 0.0
        %285 = vmatpush1.xpose.msra.mxu0 %v283
        %286 = vmatprep.subr.mxu0 0.0
        %287 = vmatpush1.xpose.msra.mxu0 %v282
        %288 = vmatprep.subr.mxu0 0.0
        %289 = vmatpush1.xpose.msra.mxu0 %v281
        %290 = vmatprep.subr.mxu0 0.0
        %291 = vmatpush1.xpose.msra.mxu0 %v280
        %292 = vmatprep.subr.mxu0 0.0
        %293 = vmatpush1.xpose.msra.mxu0 %v279
        %294 = vmatprep.subr.mxu0 0.0
        %295 = vmatpush1.xpose.msra.mxu0 %v278
        %296 = vmatprep.subr.mxu0 0.0
        %297 = vmatpush1.xpose.msra.mxu0 %v277
        %298 = vmatprep.subr.mxu0 0.0
        %299 = vmatpush1.xpose.msra.mxu0 %v276
        %300 = vmatprep.subr.mxu0 0.0
        %301 = vmatpush1.xpose.msra.mxu0 %v275
        %302 = vmatprep.subr.mxu0 0.0
        %303 = vmatpush1.xpose.msra.mxu0 %v274
        %304 = vmatprep.subr.mxu0 0.0
        %305 = vmatpush1.xpose.msra.mxu0 %v273
        %306 = vmatprep.subr.mxu0 0.0
        %307 = vmatpush1.xpose.msra.mxu0 %v272
        %308 = vmatprep.subr.mxu0 0.0
        %309 = vmatpush1.xpose.msra.mxu0 %v271
        %310 = vmatprep.subr.mxu0 0.0
        %311 = vmatpush1.xpose.msra.mxu0 %v270
        %312 = vmatprep.subr.mxu0 0.0
        %313 = vmatpush1.xpose.msra.mxu0 %v269
        %314 = vmatprep.subr.mxu0 0.0
        %315 = vmatpush1.xpose.msra.mxu0 %v268
        %316 = vmatprep.subr.mxu0 0.0
        %317 = vmatpush2.xpose.msra.mxu0 0.0
        %318 = vmatprep.subr.mxu0 0.0
        %319 = vmatpush2.xpose.msra.mxu0 0.0
        %320 = vmatprep.subr.mxu0 0.0
        %321 = vmatpush2.xpose.msra.mxu0 0.0
        %322 = vmatprep.subr.mxu0 0.0
        %323 = vmatpush2.xpose.msra.mxu0 0.0
        %324 = vmatprep.subr.mxu0 0.0
        %325 = vmatpush2.xpose.msra.mxu0 0.0
        %326 = vmatprep.subr.mxu0 0.0
        %327 = vmatpush2.xpose.msra.mxu0 0.0
        %328 = vmatprep.subr.mxu0 0.0
        %329 = vmatpush2.xpose.msra.mxu0 0.0
        %330 = vmatprep.subr.mxu0 0.0
        %331 = vmatpush2.xpose.msra.mxu0 0.0
        %332 = vmatprep.subr.mxu0 0.0
        %333 = vmatpush2.xpose.msra.mxu0 0.0
        %334 = vmatprep.subr.mxu0 0.0
        %335 = vmatpush2.xpose.msra.mxu0 0.0
        %336 = vmatprep.subr.mxu0 0.0
        %337 = vmatpush2.xpose.msra.mxu0 0.0
        %338 = vmatprep.subr.mxu0 0.0
        %339 = vmatpush2.xpose.msra.mxu0 0.0
        %340 = vmatprep.subr.mxu0 0.0
        %341 = vmatpush2.xpose.msra.mxu0 0.0
        %342 = vmatprep.subr.mxu0 0.0
        %343 = vmatpush2.xpose.msra.mxu0 0.0
        %344 = vmatprep.subr.mxu0 0.0
        %345 = vmatpush2.xpose.msra.mxu0 0.0
        %346 = vmatprep.subr.mxu0 0.0
        %347 = vmatpush2.xpose.msra.mxu0 0.0
        %348 = vmatprep.mubr.f32.mxu0 0.0
        %349 = vmatmul.mubr.f32.gmra.mxu0 %v267
        %v350 = vpop.f32.mrf.mxu0
        %v351 = vadd.f32 0.0, %v350
        %v352 = vpop.f32.mrf.mxu0
        %353 = vdwg.mxu0
        %v354 = vld [vmem:[%s2] sm:$0xff]
        %356 = vset.pattern.permute.xlu0 0
        %357 = vperm.xlu0 %356, %v354
        %v358 = vpop.permute.xlu0 %357
        %v360 = vmul.f32 %v351, %v358
        %v361 = vld [vmem:[%s263] sm:$0x1]
        %v363 = vlaneseq
        %v364 = vshrl.u32 %v363, 7
        %v365 = vsub.s32 0, %v364
        %v366 = vrot.slane %v361, %v365
        %v368 = vmul.f32 %v360, %v366
        %s369 = sld [smem:[#allocation3]]
        %p370 = scmp.ge.s32.totalorder %s369, %s265
        %p371 = scmp.lt.s32.totalorder %s369, %s266
        %p372 = pnand %p370, %p371
        %p373 = pneg %p372
        %s374 = sld [smem:[#allocation3 + $0x1]]
        %p375 = scmp.ge.s32.totalorder %s374, %s265
        %p376 = scmp.lt.s32.totalorder %s374, %s266
        %p377 = pnand %p375, %p376
        %p378 = pneg %p377
        %p379 = por %p373, %p378
        %s380 = sld [smem:[#allocation3 + $0x2]]
        %p381 = scmp.ge.s32.totalorder %s380, %s265
        %p382 = scmp.lt.s32.totalorder %s380, %s266
        %p383 = pnand %p381, %p382
        %p384 = pneg %p383
        %p385 = por %p379, %p384
        %s386 = sld [smem:[#allocation3 + $0x3]]
        %p387 = scmp.ge.s32.totalorder %s386, %s265
        %p388 = scmp.lt.s32.totalorder %s386, %s266
        %p389 = pnand %p387, %p388
        %p390 = pneg %p389
        %p391 = por %p385, %p390
        %s392 = sld [smem:[#allocation3 + $0x4]]
        %p393 = scmp.ge.s32.totalorder %s392, %s265
        %p394 = scmp.lt.s32.totalorder %s392, %s266
        %p395 = pnand %p393, %p394
        %p396 = pneg %p395
        %p397 = por %p391, %p396
        %s398 = sld [smem:[#allocation3 + $0x5]]
        %p399 = scmp.ge.s32.totalorder %s398, %s265
        %p400 = scmp.lt.s32.totalorder %s398, %s266
        %p401 = pnand %p399, %p400
        %p402 = pneg %p401
        %p403 = por %p397, %p402
        %s404 = sld [smem:[#allocation3 + $0x6]]
        %p405 = scmp.ge.s32.totalorder %s404, %s265
        %p406 = scmp.lt.s32.totalorder %s404, %s266
        %p407 = pnand %p405, %p406
        %p408 = pneg %p407
        %p409 = por %p403, %p408
        %s410 = sld [smem:[#allocation3 + $0x7]]
        %p411 = scmp.ge.s32.totalorder %s410, %s265
        %p412 = scmp.lt.s32.totalorder %s410, %s266
        %p413 = pnand %p411, %p412
        %p414 = pneg %p413
        %p415 = por %p409, %p414
        // Predicated region
        $region45: #{tpu_custom_call.1} parent=39 // pred_check
          %p416 = pneg %p415
        $region46: #{tpu_custom_call.1} parent=39 // pred_check_branch
          %418 = sbr.rel (%p416) target = $region48
        $region47: #{tpu_custom_call.1} parent=39 // pred_region
          %v419 = vmul.f32 %v368, %v368
          %v420 = vsub.f32 1.0, %v419
          %v421 = vmax.f32 %v420, 0.0
          %v422 = vrsqrt.pop %v421
          %v423 = vmul.f32 %v421, %v422
          %vm424 = vcmp.eq.f32.partialorder %v421, inf
          %v425 = vsel %vm424, %v421, %v423
          %vm426 = vcmp.eq.f32.partialorder %v421, 0.0
          %v427 = vand.u32 %v421, 2147483648
          %v428 = vsel %vm426, %v427, %v425
          %v429 = vmul.f32 %v368, 0.87758255
          %v430 = vmul.f32 %v428, 0.47942555
          %v431 = vsub.f32 %v429, %v430
          %v432 = vsub.f32 %v368, -0.87758255
          %vm433 = vcmp.gt.f32.partialorder %v432, 0.0
          %v434 = vsub.f32 %v368, 0.23971277
          %v435 = vsel %vm433, %v431, %v434
          %v436 = vlaneseq
          %v437 = vand.u32 %v436, 127
          %v438 = vstv %s265
          %v439 = vadd.s32 %v438, %v437
          %v440 = vld [vmem:[%s5] sm:$0xff]
          %441 = vset.pattern.permute.xlu0 0
          %442 = vperm.xlu0 %441, %v440
          %v443 = vpop.permute.xlu0 %442
          %vm444 = vcmp.eq.s32.totalorder %v439, %v443
          %v445 = vsel %vm444, %v435, %v368
          %v446 = vmul.f32 %v445, 48.0
          %447 = vst [vmem:[%s260] sm:$0xff] %v446
        $region48: #{tpu_custom_call.1} parent=39 // pred_fallthru
          _
        %p448 = pneg %p415
        // Predicated region
        $region49: #{tpu_custom_call.1} parent=39 // pred_check
          _
        $region50: #{tpu_custom_call.1} parent=39 // pred_check_branch
          %450 = sbr.rel (%p415) target = $region52
        $region51: #{tpu_custom_call.1} parent=39 // pred_region
          %v451 = vmul.f32 %v368, 48.0
          %452 = vst [vmem:[%s260] sm:$0xff] %v451
        $region52: #{tpu_custom_call.1} parent=39 // pred_fallthru
          _
        %s453 = sand.u32 %s152, 1
        %s454 = scalar_lea.sflag [#allocation6], %s453
        %s455 = sand.u32 %s152, 1
        %s456 = smul.addr %s455, 8
        %s457 = scalar_lea.vmem [#allocation7], %s456
        // Predicated region
        $region53: #{tpu_custom_call.1} parent=39 // pred_check
          %p458 = pneg %p162
        $region54: #{tpu_custom_call.1} parent=39 // pred_check_branch
          %460 = sbr.rel (%p458) target = $region56
        $region55: #{tpu_custom_call.1} parent=39 // pred_region
          %s462 = ssub.s32 128, 128
          %463 = vsyncadd %s454, %s462
          %s464 = smul.addr %s29, 128
          %s465 = scalar_lea.hbm %s6, %s464
          %s467 = sshll.u32 %s457, 4
          %s468 = int_to_ptr.vmem [resolvable:$true] %s467
          %470 = dma.vmem_to_hbm [thread:$0]  %s468, 128, %s465, %s454
        $region56: #{tpu_custom_call.1} parent=39 // pred_fallthru
          _
      $region40: #{tpu_custom_call.1} parent=5 // pred_fallthru
        _
      %p471 = scmp.le.s32.totalorder 2, %s24
      // Predicated region
      $region57: #{tpu_custom_call.1} parent=5 // pred_check
        %p472 = pneg %p471
      $region58: #{tpu_custom_call.1} parent=5 // pred_check_branch
        %474 = sbr.rel (%p472) target = $region60
      $region59: #{tpu_custom_call.1} parent=5 // pred_region
        %s475 = ssub.s32 %s24, 2
        // Predicated region
        $region61: #{tpu_custom_call.1} parent=59 // pred_check
          %p476 = pneg %p168
        $region62: #{tpu_custom_call.1} parent=59 // pred_check_branch
          %478 = sbr.rel (%p476) target = $region64
        $region63: #{tpu_custom_call.1} parent=59 // pred_region
          %s479 = sand.u32 %s153, 1
          %s480 = scalar_lea.sflag [#allocation6], %s479
          %s481 = sand.u32 %s153, 1
          %s482 = smul.addr %s481, 8
          %s483 = scalar_lea.vmem [#allocation7], %s482
          %484 = dma.done %s480, 128
        $region64: #{tpu_custom_call.1} parent=59 // pred_fallthru
          _
      $region60: #{tpu_custom_call.1} parent=5 // pred_fallthru
        _
    $region6: #{tpu_custom_call.1} parent=1 // loop_footer
      %s28 = sadd.s32 1, %s24
    $region7: #{tpu_custom_call.1} parent=1 // loop_footer_branch
      %23 = sbr.rel target = $region3
    $region8: #{tpu_custom_call.1} parent=1 // loop_exit
      _
    %485 = vsyncpa [#allocation5], 1
    %s486 = scalar_lea.sflag [#allocation5], 1
    %487 = vsyncpa %s486, 1
    %488 = vsyncpa [#allocation6], 1
    %s489 = scalar_lea.sflag [#allocation6], 1
    %490 = vsyncpa %s489, 1

</llo_original>
